<compile_context>
chip_gen: v7x
topology: tpu7x:2x2x1
jax: 0.10.0
libtpu: 0.0.40
codegen_flags: <defaults>
</compile_context>

<pallas_src>
import jax
import jax.numpy as jnp
from jax.experimental import pallas as pl
from jax.experimental.pallas import tpu as pltpu


# ---------------------------------------------------------------------------
# Kernel: one batch tile x one hidden-dim (F) block.
#   x_ref:  (tile_b, F_pad)   native dtype (cast to compute dtype in-kernel)
#   w1_ref: (F_pad, tile_f)   compute dtype (bf16 by default)
#   w2_ref: (tile_f, P_pad)   compute dtype
#   o_ref:  (tile_b, P_pad)   out dtype (written on the last F step)
#   acc_ref:(tile_b, P_pad)   f32 accumulator scratch
# relu(x @ W1) @ W2 == sum_c relu(x @ W1[:, c_blk]) @ W2[c_blk, :]
# (ReLU is elementwise over h, whose columns partition by the F blocks).
# ---------------------------------------------------------------------------
def projector_kernel(x_ref, w1_ref, w2_ref, o_ref, acc_ref):
    c = pl.program_id(1)

    @pl.when(c == 0)
    def _():
        acc_ref[...] = jnp.zeros_like(acc_ref)

    cdt = w1_ref.dtype
    x = x_ref[...].astype(cdt)
    h = jnp.dot(x, w1_ref[...], preferred_element_type=jnp.float32)
    h = jnp.maximum(h, 0.0)  # ReLU in f32
    acc_ref[...] += jnp.dot(h.astype(cdt), w2_ref[...],
                            preferred_element_type=jnp.float32)

    @pl.when(c == pl.num_programs(1) - 1)
    def _():
        o_ref[...] = acc_ref[...].astype(o_ref.dtype)


# ---------------------------------------------------------------------------
# Tiling helpers
# ---------------------------------------------------------------------------
def _round_up(x, m):
    return ((x + m - 1) // m) * m


def _num_tensorcores():
    """2 on dual-TC v7x, else 1.  Only used as a tiling heuristic."""
    try:
        kind = jax.devices()[0].device_kind.lower()
        if "v7" in kind:
            return 2
    except Exception:
        pass
    return 1


def _vmem_budget():
    """Per-kernel VMEM budget (bytes), generation-aware, v7x-safe fallback."""
    cap = None
    try:
        cap = pltpu.get_tpu_info().vmem_capacity_bytes
    except Exception:
        cap = None
    if not cap:
        cap = 64 << 20  # v7x per-TC physical VMEM (most restrictive generation)
    # leave headroom for Mosaic internal scratch / spill slabs
    return int(cap * 0.6)


def _vmem_estimate(tile_b, tile_f, F_pad, P_pad, x_bytes, w_bytes, out_bytes):
    x_blk = 2 * tile_b * F_pad * x_bytes        # double-buffered x tile
    w1_blk = 2 * F_pad * tile_f * w_bytes       # double-buffered W1 column block
    w2_blk = 2 * tile_f * P_pad * w_bytes       # double-buffered W2 row block
    o_blk = 2 * tile_b * P_pad * out_bytes      # double-buffered output tile
    acc = tile_b * P_pad * 4                    # f32 accumulator scratch
    h = tile_b * tile_f * 4                     # f32 intermediate of first dot
    return x_blk + w1_blk + w2_blk + o_blk + acc + h


def _choose_tile_b(batch, num_tc):
    """Target batch-tile size (before VMEM / divisibility adjustments)."""
    b8 = _round_up(batch, 8)
    if num_tc > 1 and batch > 16:
        # dual-TC (v7x): give each TensorCore at least one batch tile.
        target = _round_up(-(-batch // num_tc), 8)
    else:
        # single-TC (v5e/v6e): one fat tile amortizes the ~0.35us/step overhead
        # and fills MXU M-rows; the VMEM shrink loop trims it if needed.
        target = b8
    return min(target, 512)


def _next_smaller_tile_f(F_pad, current):
    for d in range(current - 128, 127, -128):
        if F_pad % d == 0:
            return d
    return None


# ---------------------------------------------------------------------------
# Wrapper
# ---------------------------------------------------------------------------
def projector(x, w1_t, w2_t, *, tile_b=None, use_bf16_operands=True):
    """x: (B, F); w1_t: (F, F); w2_t: (F, P); weights stored (in, out).

    Computes relu(x @ W1) @ W2 with f32 accumulation; returns (B, P) in x.dtype.
    """
    B, F = x.shape
    F2, P = w2_t.shape
    assert w1_t.shape == (F, F) and F2 == F

    out_dtype = x.dtype
    compute_dtype = jnp.bfloat16 if use_bf16_operands else x.dtype
    w_bytes = jnp.dtype(compute_dtype).itemsize
    out_bytes = jnp.dtype(out_dtype).itemsize
    x_est_bytes = jnp.dtype(x.dtype).itemsize  # conservative (padded path is <=)

    # Lane/sublane-friendly padding; P padded to 128 keeps the output lane-dense.
    F_pad = _round_up(F, 128)
    P_pad = _round_up(P, 128)

    # ---- batch tile ---------------------------------------------------------
    num_tc = _num_tensorcores()
    target = tile_b if tile_b is not None else _choose_tile_b(B, num_tc)
    target = max(8, min(_round_up(target, 8), _round_up(B, 8), 512))
    tb = None
    if B % 8 == 0:
        # prefer a multiple-of-8 divisor of B -> no batch padding / extra copy
        for t in range(target, 7, -8):
            if B % t == 0:
                tb = t
                break
    if tb is None:
        tb = target

    # ---- hidden-dim tile + VMEM-aware shrink -------------------------------
    budget = _vmem_budget()
    tile_f = F_pad

    def est(a, b):
        return _vmem_estimate(a, b, F_pad, P_pad, x_est_bytes, w_bytes, out_bytes)

    while est(tb, tile_f) > budget:
        tf_next = _next_smaller_tile_f(F_pad, tile_f)
        if tf_next is not None:
            tile_f = tf_next
        elif tb > 8:
            tb = max(8, _round_up(tb // 2, 8))
        else:
            raise ValueError(
                "Projector Pallas kernel does not fit in VMEM even at the "
                f"smallest tiles (F_pad={F_pad}, P_pad={P_pad}).")

    B_pad = B if B % tb == 0 else _round_up(B, tb)

    # ---- operand prep -------------------------------------------------------
    # x: pass native dtype straight through when no padding is needed (cast
    # happens inside the kernel -> no extra HBM pass over the dominant stream).
    pad_x = (B_pad != B) or (F_pad != F)
    if pad_x:
        xp = jnp.zeros((B_pad, F_pad), compute_dtype).at[:B, :F].set(
            x.astype(compute_dtype))
    else:
        xp = x

    if F_pad != F:
        w1p = jnp.zeros((F_pad, F_pad), compute_dtype).at[:F, :F].set(
            w1_t.astype(compute_dtype))
    else:
        w1p = w1_t.astype(compute_dtype)
    if F_pad != F or P_pad != P:
        w2p = jnp.zeros((F_pad, P_pad), compute_dtype).at[:F, :P].set(
            w2_t.astype(compute_dtype))
    else:
        w2p = w2_t.astype(compute_dtype)

    # ---- pallas_call --------------------------------------------------------
    grid = (B_pad // tb, F_pad // tile_f)
    vmem_limit = max(int(est(tb, tile_f)) + (4 << 20), 16 << 20)

    cost = pl.CostEstimate(
        flops=2 * B_pad * F_pad * (F_pad + P_pad),
        transcendentals=0,
        bytes_accessed=(B_pad * F_pad * jnp.dtype(xp.dtype).itemsize
                        + (F_pad * F_pad + F_pad * P_pad) * w_bytes
                        + B_pad * P_pad * out_bytes),
    )

    # TODO(synk): verify the "parallel" batch axis core-shards on dual-TC v7x;
    # if not, switch it to pltpu.CORE_PARALLEL (or a size-2 core_map axis).
    out_pad = pl.pallas_call(
        projector_kernel,
        out_shape=jax.ShapeDtypeStruct((B_pad, P_pad), out_dtype),
        grid_spec=pltpu.PrefetchScalarGridSpec(
            num_scalar_prefetch=0,
            grid=grid,
            in_specs=[
                # x: tiled over the batch axis, resident across the F axis.
                pl.BlockSpec((tb, F_pad), lambda i, c: (i, 0)),
                # W1: streamed by column blocks over the F axis.
                pl.BlockSpec((F_pad, tile_f), lambda i, c: (0, c)),
                # W2: streamed by row blocks over the F axis.
                pl.BlockSpec((tile_f, P_pad), lambda i, c: (c, 0)),
            ],
            # Lane-dense output (P_pad multiple of 128), constant across F axis.
            out_specs=pl.BlockSpec((tb, P_pad), lambda i, c: (i, 0)),
            scratch_shapes=[pltpu.VMEM((tb, P_pad), jnp.float32)],
        ),
        compiler_params=pltpu.CompilerParams(
            dimension_semantics=("parallel", "arbitrary"),
            vmem_limit_bytes=vmem_limit,
        ),
        cost_estimate=cost,
    )(xp, w1p, w2p)

    return out_pad[:B, :P]


def projector_ref(x, w1_t, w2_t, cast_to=jnp.bfloat16):
    """Pure-JAX reference matching the kernel's operand dtype / f32 accumulation."""
    if cast_to is not None:
        x, w1_t, w2_t = (a.astype(cast_to) for a in (x, w1_t, w2_t))
    h = jnp.maximum(jnp.dot(x, w1_t, preferred_element_type=jnp.float32), 0.0)
    if cast_to is not None:
        h = h.astype(cast_to)
    return jnp.dot(h, w2_t, preferred_element_type=jnp.float32)


if __name__ == "__main__":
    n_features = 128
    projection_dim = 64
    batch = 8

    key = jax.random.PRNGKey(0)
    kx, k1, k2 = jax.random.split(key, 3)

    x = jax.random.normal(kx, (batch, n_features), dtype=jnp.float32)

    # PyTorch nn.Linear stores weight as (out, in); we keep the transposed
    # (in, out) layout so the kernel computes x @ W directly (== x @ weight.T).
    bound = 1.0 / jnp.sqrt(n_features)
    w1_t = jax.random.uniform(k1, (n_features, n_features),
                              minval=-bound, maxval=bound, dtype=jnp.float32)
    w2_t = jax.random.uniform(k2, (n_features, projection_dim),
                              minval=-bound, maxval=bound, dtype=jnp.float32)

    out = projector(x, w1_t, w2_t)
    out = jax.block_until_ready(out)
    assert out.shape == (batch, projection_dim)

    # Bit-compatible reference (bf16 operands, f32 accumulation).
    ref_bf16 = projector_ref(x, w1_t, w2_t, cast_to=jnp.bfloat16)
    assert jnp.allclose(out, ref_bf16, atol=1e-2, rtol=1e-2), "mismatch vs bf16 ref"

    # Semantics check against the pure-f32 PyTorch module (bf16-rounding slack).
    ref_f32 = projector_ref(x, w1_t, w2_t, cast_to=None)
    assert jnp.allclose(out, ref_f32, atol=5e-2, rtol=5e-2), "mismatch vs f32 ref"

    # Also exercise the batch-padding path (B not a multiple of 8).
    x5 = jax.random.normal(kx, (5, n_features), dtype=jnp.float32)
    out5 = jax.block_until_ready(projector(x5, w1_t, w2_t))
    ref5 = projector_ref(x5, w1_t, w2_t, cast_to=jnp.bfloat16)
    assert out5.shape == (5, projection_dim)
    assert jnp.allclose(out5, ref5, atol=1e-2, rtol=1e-2), "mismatch (padded batch)"

    print("KERNEL_OK")
</pallas_src>

<mosaic_0001>
module attributes {stable_mosaic.version = 11 : i64} {
  func.func @projector_kernel(%arg0: i32, %arg1: i32, %arg2: memref<8x128xf32, #tpu.memory_space<vmem>>, %arg3: memref<128x128xbf16, #tpu.memory_space<vmem>>, %arg4: memref<128x128xbf16, #tpu.memory_space<vmem>>, %arg5: memref<8x128xf32, #tpu.memory_space<vmem>>, %arg6: memref<8x128xf32, #tpu.memory_space<vmem>>) attributes {dimension_semantics = [#tpu.dimension_semantics<parallel>, #tpu.dimension_semantics<arbitrary>], iteration_bounds = array<i64: 1, 1>, scalar_prefetch = 0 : i64, scratch_operands = 1 : i64, tpu.core_type = #tpu.core_type<tc>, window_params = [{transform_indices = @transform_0, window_bounds = array<i64: 8, 128>}, {transform_indices = @transform_1, window_bounds = array<i64: 128, 128>}, {transform_indices = @transform_2, window_bounds = array<i64: 128, 128>}, {transform_indices = @transform_3, window_bounds = array<i64: 8, 128>}]} {
    %c0_i32 = arith.constant 0 : i32
    %0 = arith.cmpi eq, %arg1, %c0_i32 : i32
    %1 = arith.extui %0 : i1 to i32
    %c0_i32_0 = arith.constant 0 : i32
    %2 = arith.cmpi ne, %1, %c0_i32_0 : i32
    scf.if %2 {
      %cst_14 = arith.constant 0.000000e+00 : f32
      %18 = vector.broadcast %cst_14 : f32 to vector<8x128xf32>
      %c0_15 = arith.constant 0 : index
      %c0_16 = arith.constant 0 : index
      %19 = vector.load %arg6[%c0_15, %c0_16] : memref<8x128xf32, #tpu.memory_space<vmem>>, vector<8x128xf32>
      tpu.vector_store %arg6[%c0_15, %c0_16], %18 {strides = array<i32>} : memref<8x128xf32, #tpu.memory_space<vmem>>, vector<8x128xf32>,
    } else {
    }
    %c0 = arith.constant 0 : index
    %c0_1 = arith.constant 0 : index
    %3 = vector.load %arg2[%c0, %c0_1] : memref<8x128xf32, #tpu.memory_space<vmem>>, vector<8x128xf32>
    %4 = arith.truncf %3 : vector<8x128xf32> to vector<8x128xbf16>
    %c0_2 = arith.constant 0 : index
    %c0_3 = arith.constant 0 : index
    %5 = vector.load %arg3[%c0_2, %c0_3] : memref<128x128xbf16, #tpu.memory_space<vmem>>, vector<128x128xbf16>
    %cst = arith.constant dense<0.000000e+00> : vector<8x128xf32>
    %6 = tpu.matmul %4, %5, %cst {dimension_numbers = #tpu.dot_dimension_numbers<[1], [0], [0], [1], [0, 0, 1, 1], [], []>} : vector<8x128xbf16>, vector<128x128xbf16>, vector<8x128xf32> -> vector<8x128xf32>
    %cst_4 = arith.constant 0.000000e+00 : f32
    %7 = vector.broadcast %cst_4 : f32 to vector<8x128xf32>
    %8 = arith.maximumf %6, %7 : vector<8x128xf32>
    %c0_5 = arith.constant 0 : index
    %c0_6 = arith.constant 0 : index
    %9 = vector.load %arg6[%c0_5, %c0_6] : memref<8x128xf32, #tpu.memory_space<vmem>>, vector<8x128xf32>
    %10 = arith.truncf %8 : vector<8x128xf32> to vector<8x128xbf16>
    %c0_7 = arith.constant 0 : index
    %c0_8 = arith.constant 0 : index
    %11 = vector.load %arg4[%c0_7, %c0_8] : memref<128x128xbf16, #tpu.memory_space<vmem>>, vector<128x128xbf16>
    %cst_9 = arith.constant dense<0.000000e+00> : vector<8x128xf32>
    %12 = tpu.matmul %10, %11, %cst_9 {dimension_numbers = #tpu.dot_dimension_numbers<[1], [0], [0], [1], [0, 0, 1, 1], [], []>} : vector<8x128xbf16>, vector<128x128xbf16>, vector<8x128xf32> -> vector<8x128xf32>
    %13 = arith.addf %9, %12 : vector<8x128xf32>
    %c0_10 = arith.constant 0 : index
    %c0_11 = arith.constant 0 : index
    %14 = vector.load %arg6[%c0_10, %c0_11] : memref<8x128xf32, #tpu.memory_space<vmem>>, vector<8x128xf32>
    tpu.vector_store %arg6[%c0_10, %c0_11], %13 {strides = array<i32>} : memref<8x128xf32, #tpu.memory_space<vmem>>, vector<8x128xf32>,
    %c0_i32_12 = arith.constant 0 : i32
    %15 = arith.cmpi eq, %arg1, %c0_i32_12 : i32
    %16 = arith.extui %15 : i1 to i32
    %c0_i32_13 = arith.constant 0 : i32
    %17 = arith.cmpi ne, %16, %c0_i32_13 : i32
    scf.if %17 {
      %c0_14 = arith.constant 0 : index
      %c0_15 = arith.constant 0 : index
      %18 = vector.load %arg6[%c0_14, %c0_15] : memref<8x128xf32, #tpu.memory_space<vmem>>, vector<8x128xf32>
      %c0_16 = arith.constant 0 : index
      %c0_17 = arith.constant 0 : index
      %19 = vector.load %arg5[%c0_16, %c0_17] : memref<8x128xf32, #tpu.memory_space<vmem>>, vector<8x128xf32>
      tpu.vector_store %arg5[%c0_16, %c0_17], %18 {strides = array<i32>} : memref<8x128xf32, #tpu.memory_space<vmem>>, vector<8x128xf32>,
    } else {
    }
    return
  }
  func.func @transform_0(%arg0: i32, %arg1: i32) -> (i32, i32) {
    %c0_i32 = arith.constant 0 : i32
    %c0_i32_0 = arith.constant 0 : i32
    return %arg0, %c0_i32 : i32, i32
  }
  func.func @transform_1(%arg0: i32, %arg1: i32) -> (i32, i32) {
    %c0_i32 = arith.constant 0 : i32
    %c0_i32_0 = arith.constant 0 : i32
    return %c0_i32, %arg1 : i32, i32
  }
  func.func @transform_2(%arg0: i32, %arg1: i32) -> (i32, i32) {
    %c0_i32 = arith.constant 0 : i32
    %c0_i32_0 = arith.constant 0 : i32
    return %arg1, %c0_i32 : i32, i32
  }
  func.func @transform_3(%arg0: i32, %arg1: i32) -> (i32, i32) {
    %c0_i32 = arith.constant 0 : i32
    %c0_i32_0 = arith.constant 0 : i32
    return %arg0, %c0_i32 : i32, i32
  }
}

</mosaic_0001>

<llo_original>
// kernel: tpu_custom_call.1
$region0: #{tpu_custom_call.1}
  #allocation0 [shape = 'u32[]', space=smem, size = 0x4, offset = 0x4, fixed_abs, tag = 'smem constant byte address 0x4 - core index']
  #allocation1 [shape = 'u32[144,128]{1,0:T(1,128)}', space=vmem, size = 0x12000, scoped, tag = 'internal scratch']
  #allocation2 [shape = 'f32[8,128]{1,0:T(8,128)}', space=vmem, size = 0x1000, scoped, tag = 'scratch operand']
  %s0 = inlined_call_operand.hbm [shape: f32[8,128], index: 0, kind: input, shape index: {}]
  %s1 = inlined_call_operand.hbm [shape: bf16[128,128], index: 1, kind: input, shape index: {}]
  %s2 = inlined_call_operand.hbm [shape: bf16[128,128], index: 2, kind: input, shape index: {}]
  %s3 = inlined_call_operand.hbm [shape: f32[8,128], index: 3, kind: output, shape index: {}]
  %s4 = sld [smem:[#allocation0]]
  $region42: #{tpu_custom_call.1} parent=0
    _
  %s6 = ssub.s32 1, %s4
  %s7 = scalar_select 0, %s6, %s4
  $region1: #{tpu_custom_call.1} parent=0
    #allocation3 [shape = 'u8[4096]{0}', space=vmem, size = 0x1000, scoped, tag = 'input window, operand 0, single buffered']
    #allocation4 [shape = 's32[1]{0}', space=sflag, size = 0x4, scoped, tag = 'scoped memory for tpu_custom_call.1']
    #allocation5 [shape = 's32[1]{0}', space=sflag, size = 0x4, scoped, tag = 'scoped memory for tpu_custom_call.1']
    #allocation6 [shape = 'u8[32768]{0}', space=vmem, size = 0x8000, scoped, tag = 'input window, operand 1, single buffered']
    #allocation7 [shape = 's32[1]{0}', space=sflag, size = 0x4, scoped, tag = 'scoped memory for tpu_custom_call.1']
    #allocation8 [shape = 'u8[32768]{0}', space=vmem, size = 0x8000, scoped, tag = 'input window, operand 2, single buffered']
    #allocation9 [shape = 'u8[4096]{0}', space=vmem, size = 0x1000, scoped, tag = 'output window, operand 0, single buffered']
    %8 = vsyncpa [#allocation4], 0
    %9 = vsyncpa [#allocation7], 0
    %10 = vsyncpa [#allocation5], 0
    // Predicated region
    $region2: #{tpu_custom_call.1} parent=1 // pred_check
      _
    $region3: #{tpu_custom_call.1} parent=1 // pred_check_branch
      %12 = sbr.rel (0) target = $region5
    $region4: #{tpu_custom_call.1} parent=1 // pred_region
      %s14 = ssub.s32 128, 128
      %15 = vsyncadd [#allocation4], %s14
      %s17 = sshll.u32 [#allocation3], 4
      %s18 = int_to_ptr.vmem [resolvable:$true] %s17
      %20 = dma.hbm_to_vmem [thread:$0]  %s0, 128, %s18, [#allocation4]
    $region5: #{tpu_custom_call.1} parent=1 // pred_fallthru
      _
    // Predicated region
    $region6: #{tpu_custom_call.1} parent=1 // pred_check
      _
    $region7: #{tpu_custom_call.1} parent=1 // pred_check_branch
      %22 = sbr.rel (0) target = $region9
    $region8: #{tpu_custom_call.1} parent=1 // pred_region
      %s24 = ssub.s32 1024, 1024
      %25 = vsyncadd [#allocation7], %s24
      %s26 = sshll.u32 [#allocation6], 4
      %s27 = int_to_ptr.vmem [resolvable:$true] %s26
      %32 = dma.hbm_to_vmem [thread:$0]  %s1, 1024, %s27, [#allocation7], 64, 64, 4
    $region9: #{tpu_custom_call.1} parent=1 // pred_fallthru
      _
    // Predicated region
    $region10: #{tpu_custom_call.1} parent=1 // pred_check
      _
    $region11: #{tpu_custom_call.1} parent=1 // pred_check_branch
      %34 = sbr.rel (0) target = $region13
    $region12: #{tpu_custom_call.1} parent=1 // pred_region
      %s36 = ssub.s32 1024, 1024
      %37 = vsyncadd [#allocation7], %s36
      %s38 = sshll.u32 [#allocation8], 4
      %s39 = int_to_ptr.vmem [resolvable:$true] %s38
      %44 = dma.hbm_to_vmem [thread:$0]  %s2, 1024, %s39, [#allocation7], 64, 64, 4
    $region13: #{tpu_custom_call.1} parent=1 // pred_fallthru
      _
    // Predicated region
    $region14: #{tpu_custom_call.1} parent=1 // pred_check
      _
    $region15: #{tpu_custom_call.1} parent=1 // pred_check_branch
      %46 = sbr.rel (0) target = $region17
    $region16: #{tpu_custom_call.1} parent=1 // pred_region
      %47 = dma.done [#allocation4], 128
    $region17: #{tpu_custom_call.1} parent=1 // pred_fallthru
      _
    // Predicated region
    $region18: #{tpu_custom_call.1} parent=1 // pred_check
      _
    $region19: #{tpu_custom_call.1} parent=1 // pred_check_branch
      %49 = sbr.rel (0) target = $region21
    $region20: #{tpu_custom_call.1} parent=1 // pred_region
      %50 = dma.done [#allocation7], 1024
    $region21: #{tpu_custom_call.1} parent=1 // pred_fallthru
      _
    // Predicated region
    $region22: #{tpu_custom_call.1} parent=1 // pred_check
      _
    $region23: #{tpu_custom_call.1} parent=1 // pred_check_branch
      %52 = sbr.rel (0) target = $region25
    $region24: #{tpu_custom_call.1} parent=1 // pred_region
      %53 = dma.done [#allocation7], 1024
    $region25: #{tpu_custom_call.1} parent=1 // pred_fallthru
      _
    %p55 = scmp.eq.s32.totalorder 0, 0
    // Predicated region
    $region26: #{tpu_custom_call.1} parent=1 // pred_check
      %p56 = pneg %p55
    $region27: #{tpu_custom_call.1} parent=1 // pred_check_branch
      %58 = sbr.rel (%p56) target = $region29
    $region28: #{tpu_custom_call.1} parent=1 // pred_region
      %59 = vst [vmem:[#allocation2] sm:$0xff] 0.0
    $region29: #{tpu_custom_call.1} parent=1 // pred_fallthru
      _
    %v60 = vld [vmem:[#allocation3] sm:$0xff]
    %v61 = vpack.c.bf16 %v60, %v60
    %v62 = vld [vmem:[#allocation6] sm:$0xf]
    %v63 = vld [vmem:[#allocation6 + $0x4] sm:$0xf]
    %v64 = vld [vmem:[#allocation6 + $0x8] sm:$0xf]
    %v65 = vld [vmem:[#allocation6 + $0xc] sm:$0xf]
    %v66 = vld [vmem:[#allocation6 + $0x10] sm:$0xf]
    %v67 = vld [vmem:[#allocation6 + $0x14] sm:$0xf]
    %v68 = vld [vmem:[#allocation6 + $0x18] sm:$0xf]
    %v69 = vld [vmem:[#allocation6 + $0x1c] sm:$0xf]
    %v70 = vld [vmem:[#allocation6 + $0x20] sm:$0xf]
    %v71 = vld [vmem:[#allocation6 + $0x24] sm:$0xf]
    %v72 = vld [vmem:[#allocation6 + $0x28] sm:$0xf]
    %v73 = vld [vmem:[#allocation6 + $0x2c] sm:$0xf]
    %v74 = vld [vmem:[#allocation6 + $0x30] sm:$0xf]
    %v75 = vld [vmem:[#allocation6 + $0x34] sm:$0xf]
    %v76 = vld [vmem:[#allocation6 + $0x38] sm:$0xf]
    %v77 = vld [vmem:[#allocation6 + $0x3c] sm:$0xf]
    %v94 = vunpack.c.l.b16 %v62
    %v95 = vunpack.c.l.b16 %v63
    %v96 = vunpack.c.l.b16 %v64
    %v97 = vunpack.c.l.b16 %v65
    %v98 = vunpack.c.l.b16 %v66
    %v99 = vunpack.c.l.b16 %v67
    %v100 = vunpack.c.l.b16 %v68
    %v101 = vunpack.c.l.b16 %v69
    %v102 = vunpack.c.l.b16 %v70
    %v103 = vunpack.c.l.b16 %v71
    %v104 = vunpack.c.l.b16 %v72
    %v105 = vunpack.c.l.b16 %v73
    %v106 = vunpack.c.l.b16 %v74
    %v107 = vunpack.c.l.b16 %v75
    %v108 = vunpack.c.l.b16 %v76
    %v109 = vunpack.c.l.b16 %v77
    %v110 = vpack.c.b16 %v95, %v94
    %v111 = vpack.c.b16 %v97, %v96
    %v112 = vpack.c.b16 %v99, %v98
    %v113 = vpack.c.b16 %v101, %v100
    %v114 = vpack.c.b16 %v103, %v102
    %v115 = vpack.c.b16 %v105, %v104
    %v116 = vpack.c.b16 %v107, %v106
    %v117 = vpack.c.b16 %v109, %v108
    %126 = vmatprep.subr.bf16.mxu0 0
    %127 = vmatpush1.bf16.msra.mxu0 %v110
    %128 = vmatprep.subr.bf16.mxu0 0
    %129 = vmatpush1.bf16.msra.mxu0 %v111
    %130 = vmatprep.subr.bf16.mxu0 0
    %131 = vmatpush1.bf16.msra.mxu0 %v112
    %132 = vmatprep.subr.bf16.mxu0 0
    %133 = vmatpush1.bf16.msra.mxu0 %v113
    %134 = vmatprep.subr.bf16.mxu0 0
    %135 = vmatpush1.bf16.msra.mxu0 %v114
    %136 = vmatprep.subr.bf16.mxu0 0
    %137 = vmatpush1.bf16.msra.mxu0 %v115
    %138 = vmatprep.subr.bf16.mxu0 0
    %139 = vmatpush1.bf16.msra.mxu0 %v116
    %140 = vmatprep.subr.bf16.mxu0 0
    %141 = vmatpush1.bf16.msra.mxu0 %v117
    %142 = vmatprep.subr.bf16.mxu0 0
    %143 = vmatpush1.bf16.msra.mxu0 0
    %144 = vmatprep.subr.bf16.mxu0 0
    %145 = vmatpush1.bf16.msra.mxu0 0
    %146 = vmatprep.subr.bf16.mxu0 0
    %147 = vmatpush1.bf16.msra.mxu0 0
    %148 = vmatprep.subr.bf16.mxu0 0
    %149 = vmatpush1.bf16.msra.mxu0 0
    %150 = vmatprep.subr.bf16.mxu0 0
    %151 = vmatpush1.bf16.msra.mxu0 0
    %152 = vmatprep.subr.bf16.mxu0 0
    %153 = vmatpush1.bf16.msra.mxu0 0
    %154 = vmatprep.subr.bf16.mxu0 0
    %155 = vmatpush1.bf16.msra.mxu0 0
    %156 = vmatprep.subr.bf16.mxu0 0
    %157 = vmatpush1.bf16.msra.mxu0 0
    %158 = vmatprep.mubr.bf16.mxu0 0
    %159 = vmatmul.mubr.bf16.gmra.mrb[0].mxu0 %v61
    %v160 = vpop.f32.mrb[0].mxu0
    %v161 = vadd.f32 0.0, %v160
    %v162 = vpop.f32.mrb[0].mxu0
    %v163 = vpop.f32.mrb[0].mxu0
    %v164 = vpop.f32.mrb[0].mxu0
    %165 = vdwg.mxu0
    %v166 = vmax.f32 %v161, 0.0
    %v167 = vld [vmem:[#allocation2] sm:$0xff]
    %v168 = vpack.c.bf16 %v166, %v166
    %v169 = vld [vmem:[#allocation8] sm:$0xf]
    %v170 = vld [vmem:[#allocation8 + $0x4] sm:$0xf]
    %v171 = vld [vmem:[#allocation8 + $0x8] sm:$0xf]
    %v172 = vld [vmem:[#allocation8 + $0xc] sm:$0xf]
    %v173 = vld [vmem:[#allocation8 + $0x10] sm:$0xf]
    %v174 = vld [vmem:[#allocation8 + $0x14] sm:$0xf]
    %v175 = vld [vmem:[#allocation8 + $0x18] sm:$0xf]
    %v176 = vld [vmem:[#allocation8 + $0x1c] sm:$0xf]
    %v177 = vld [vmem:[#allocation8 + $0x20] sm:$0xf]
    %v178 = vld [vmem:[#allocation8 + $0x24] sm:$0xf]
    %v179 = vld [vmem:[#allocation8 + $0x28] sm:$0xf]
    %v180 = vld [vmem:[#allocation8 + $0x2c] sm:$0xf]
    %v181 = vld [vmem:[#allocation8 + $0x30] sm:$0xf]
    %v182 = vld [vmem:[#allocation8 + $0x34] sm:$0xf]
    %v183 = vld [vmem:[#allocation8 + $0x38] sm:$0xf]
    %v184 = vld [vmem:[#allocation8 + $0x3c] sm:$0xf]
    %v201 = vunpack.c.l.b16 %v169
    %v202 = vunpack.c.l.b16 %v170
    %v203 = vunpack.c.l.b16 %v171
    %v204 = vunpack.c.l.b16 %v172
    %v205 = vunpack.c.l.b16 %v173
    %v206 = vunpack.c.l.b16 %v174
    %v207 = vunpack.c.l.b16 %v175
    %v208 = vunpack.c.l.b16 %v176
    %v209 = vunpack.c.l.b16 %v177
    %v210 = vunpack.c.l.b16 %v178
    %v211 = vunpack.c.l.b16 %v179
    %v212 = vunpack.c.l.b16 %v180
    %v213 = vunpack.c.l.b16 %v181
    %v214 = vunpack.c.l.b16 %v182
    %v215 = vunpack.c.l.b16 %v183
    %v216 = vunpack.c.l.b16 %v184
    %v217 = vpack.c.b16 %v202, %v201
    %v218 = vpack.c.b16 %v204, %v203
    %v219 = vpack.c.b16 %v206, %v205
    %v220 = vpack.c.b16 %v208, %v207
    %v221 = vpack.c.b16 %v210, %v209
    %v222 = vpack.c.b16 %v212, %v211
    %v223 = vpack.c.b16 %v214, %v213
    %v224 = vpack.c.b16 %v216, %v215
    %233 = vmatprep.subr.bf16.mxu0 0
    %234 = vmatpush1.bf16.msra.mxu0 %v217
    %235 = vmatprep.subr.bf16.mxu0 0
    %236 = vmatpush1.bf16.msra.mxu0 %v218
    %237 = vmatprep.subr.bf16.mxu0 0
    %238 = vmatpush1.bf16.msra.mxu0 %v219
    %239 = vmatprep.subr.bf16.mxu0 0
    %240 = vmatpush1.bf16.msra.mxu0 %v220
    %241 = vmatprep.subr.bf16.mxu0 0
    %242 = vmatpush1.bf16.msra.mxu0 %v221
    %243 = vmatprep.subr.bf16.mxu0 0
    %244 = vmatpush1.bf16.msra.mxu0 %v222
    %245 = vmatprep.subr.bf16.mxu0 0
    %246 = vmatpush1.bf16.msra.mxu0 %v223
    %247 = vmatprep.subr.bf16.mxu0 0
    %248 = vmatpush1.bf16.msra.mxu0 %v224
    %249 = vmatprep.subr.bf16.mxu0 0
    %250 = vmatpush1.bf16.msra.mxu0 0
    %251 = vmatprep.subr.bf16.mxu0 0
    %252 = vmatpush1.bf16.msra.mxu0 0
    %253 = vmatprep.subr.bf16.mxu0 0
    %254 = vmatpush1.bf16.msra.mxu0 0
    %255 = vmatprep.subr.bf16.mxu0 0
    %256 = vmatpush1.bf16.msra.mxu0 0
    %257 = vmatprep.subr.bf16.mxu0 0
    %258 = vmatpush1.bf16.msra.mxu0 0
    %259 = vmatprep.subr.bf16.mxu0 0
    %260 = vmatpush1.bf16.msra.mxu0 0
    %261 = vmatprep.subr.bf16.mxu0 0
    %262 = vmatpush1.bf16.msra.mxu0 0
    %263 = vmatprep.subr.bf16.mxu0 0
    %264 = vmatpush1.bf16.msra.mxu0 0
    %265 = vmatprep.mubr.bf16.mxu0 0
    %266 = vmatmul.mubr.bf16.gmra.mrb[0].mxu0 %v168
    %v267 = vpop.f32.mrb[0].mxu0
    %v268 = vadd.f32 0.0, %v267
    %v269 = vpop.f32.mrb[0].mxu0
    %v270 = vpop.f32.mrb[0].mxu0
    %v271 = vpop.f32.mrb[0].mxu0
    %272 = vdwg.mxu0
    %v273 = vadd.f32 %v167, %v268
    %274 = vst [vmem:[#allocation2] sm:$0xff] %v273
    // Predicated region
    $region30: #{tpu_custom_call.1} parent=1 // pred_check
      %p275 = pneg %p55
    $region31: #{tpu_custom_call.1} parent=1 // pred_check_branch
      %277 = sbr.rel (%p275) target = $region33
    $region32: #{tpu_custom_call.1} parent=1 // pred_region
      %v278 = vld [vmem:[#allocation2] sm:$0xff]
      %279 = vst [vmem:[#allocation9] sm:$0xff] %v278
    $region33: #{tpu_custom_call.1} parent=1 // pred_fallthru
      _
    // Predicated region
    $region34: #{tpu_custom_call.1} parent=1 // pred_check
      _
    $region35: #{tpu_custom_call.1} parent=1 // pred_check_branch
      %281 = sbr.rel (0) target = $region37
    $region36: #{tpu_custom_call.1} parent=1 // pred_region
      %s283 = ssub.s32 128, 128
      %284 = vsyncadd [#allocation5], %s283
      %s286 = sshll.u32 [#allocation9], 4
      %s287 = int_to_ptr.vmem [resolvable:$true] %s286
      %289 = dma.vmem_to_hbm [thread:$0]  %s287, 128, %s3, [#allocation5]
    $region37: #{tpu_custom_call.1} parent=1 // pred_fallthru
      _
    // Predicated region
    $region38: #{tpu_custom_call.1} parent=1 // pred_check
      _
    $region39: #{tpu_custom_call.1} parent=1 // pred_check_branch
      %291 = sbr.rel (0) target = $region41
    $region40: #{tpu_custom_call.1} parent=1 // pred_region
      %292 = dma.done [#allocation5], 128
    $region41: #{tpu_custom_call.1} parent=1 // pred_fallthru
      _
    %293 = vsyncpa [#allocation4], 1
    %294 = vsyncpa [#allocation7], 1
    %295 = vsyncpa [#allocation5], 1

</llo_original>
